<compile_context>
chip_gen: v6e
topology: v6e:2x2x1
jax: 0.10.0
libtpu: 0.0.40
codegen_flags: <defaults>
</compile_context>

<pallas_src>
import functools

import jax
import jax.numpy as jnp
from jax.experimental import pallas as pl
from jax.experimental.pallas import tpu as pltpu


def _round_up(x, m):
    return (x + m - 1) // m * m


# ---------------------------------------------------------------------------
# Kernel
# ---------------------------------------------------------------------------
def actor_kernel(x_ref, w1_ref, b1_ref, w2_ref, b2_ref, w3_ref, b3_ref, o_ref):
    cdt = w2_ref.dtype          # matmul input dtype (f32 or bf16); acc is f32.
    n_states = x_ref.shape[1]

    # ---- fc1 + relu --------------------------------------------------------
    if n_states <= 16:
        # Tiny contraction (Pendulum: n_states=3): a few VPU broadcast
        # multiply-adds instead of a K=3 MXU matmul.
        x = x_ref[...].astype(jnp.float32)
        w1 = w1_ref[...].astype(jnp.float32)
        h1 = b1_ref[...]                                  # (1, H1p)
        for k in range(n_states):                         # static unroll
            h1 = h1 + x[:, k:k + 1] * w1[k:k + 1, :]
    else:
        h1 = jnp.dot(x_ref[...].astype(cdt), w1_ref[...],
                     preferred_element_type=jnp.float32) + b1_ref[...]
    h1 = jnp.maximum(h1, 0.0)

    # ---- fc2 + relu --------------------------------------------------------
    h2 = jnp.dot(h1.astype(cdt), w2_ref[...],
                 preferred_element_type=jnp.float32)
    h2 = jnp.maximum(h2 + b2_ref[...], 0.0)

    # ---- fc3 + tanh --------------------------------------------------------
    h3 = jnp.dot(h2.astype(cdt), w3_ref[...],
                 preferred_element_type=jnp.float32)
    o_ref[...] = jnp.tanh(h3 + b3_ref[...]).astype(o_ref.dtype)


# ---------------------------------------------------------------------------
# One-time parameter preparation (outside the per-step jit)
# ---------------------------------------------------------------------------
def prepare_actor_params(params, dtype=jnp.bfloat16):
    """Pad weights/biases to TPU-friendly shapes once.

    Weights are stored as (in_features, out_features).  Feature (lane) dims
    are padded to multiples of 128.  W1's contraction dim is NOT padded (the
    BlockSpec uses the full array dim), so x needs no per-call padding.
    Biases stay float32 (they add into f32 accumulators).  Default dtype is
    bf16 (MXU-native on all generations); pass jnp.float32 for exact numerics.
    """
    w1, b1 = params["fc1"]
    w2, b2 = params["fc2"]
    w3, b3 = params["fc3"]
    n_states, h1 = w1.shape
    h2 = w2.shape[1]
    n_actions = w3.shape[1]

    H1p = _round_up(h1, 128)
    H2p = _round_up(h2, 128)
    Ap = _round_up(n_actions, 128)     # keep output lane-dense (unmasked vst)

    def pad_w(a, rows, cols):
        return jnp.pad(a, ((0, rows - a.shape[0]),
                           (0, cols - a.shape[1]))).astype(dtype)

    def pad_b(b, cols):
        return jnp.pad(b, (0, cols - b.shape[0])).reshape(1, cols).astype(jnp.float32)

    return (pad_w(w1, n_states, H1p), pad_b(b1, H1p),
            pad_w(w2, H1p, H2p), pad_b(b2, H2p),
            pad_w(w3, H2p, Ap), pad_b(b3, Ap))


# ---------------------------------------------------------------------------
# Forward pass
# ---------------------------------------------------------------------------
@functools.partial(jax.jit, static_argnames=("n_actions", "max_tile_b"))
def actor_forward(x, padded_params, n_actions, max_tile_b=1024):
    """x: (B, n_states) float32 (unpadded). padded_params: prepare_actor_params()."""
    w1p, b1p, w2p, b2p, w3p, b3p = padded_params
    B, n_states = x.shape
    H1p = w1p.shape[1]
    H2p = w2p.shape[1]
    Ap = w3p.shape[1]

    # Batch tiling: one tile when the batch fits, otherwise aim for exactly two
    # "parallel" grid steps (one per v7x TensorCore), capped at max_tile_b.
    # Fewer grid steps = less fixed per-step overhead; VMEM stays a few MiB.
    Bp8 = _round_up(B, 8)
    if Bp8 <= max_tile_b:
        tile_b = Bp8
    else:
        tile_b = min(max_tile_b, _round_up(pl.cdiv(Bp8, 2), 8))
    grid = (pl.cdiv(B, tile_b),)

    # Dtype-aware scheduler hint; tanh counted only over real outputs.
    w_itemsize = jnp.dtype(w2p.dtype).itemsize
    flops = 2 * B * (n_states * H1p + H1p * H2p + H2p * Ap)
    bytes_accessed = (
        4 * B * n_states                                          # x
        + w_itemsize * (n_states * H1p + H1p * H2p + H2p * Ap)    # weights
        + 4 * (H1p + H2p + Ap)                                    # biases
        + 4 * B * Ap                                              # output
    )
    cost = pl.CostEstimate(flops=flops,
                           transcendentals=B * n_actions,
                           bytes_accessed=bytes_accessed)

    out = pl.pallas_call(
        actor_kernel,
        out_shape=jax.ShapeDtypeStruct((B, Ap), jnp.float32),
        grid_spec=pltpu.PrefetchScalarGridSpec(
            num_scalar_prefetch=0,
            grid=grid,
            in_specs=[
                pl.BlockSpec((tile_b, n_states), lambda i: (i, 0)),  # x tile (unpadded)
                pl.BlockSpec((n_states, H1p), lambda i: (0, 0)),     # W1 (full, rows unpadded)
                pl.BlockSpec((1, H1p), lambda i: (0, 0)),            # b1
                pl.BlockSpec((H1p, H2p), lambda i: (0, 0)),          # W2
                pl.BlockSpec((1, H2p), lambda i: (0, 0)),            # b2
                pl.BlockSpec((H2p, Ap), lambda i: (0, 0)),           # W3
                pl.BlockSpec((1, Ap), lambda i: (0, 0)),             # b3
            ],
            out_specs=pl.BlockSpec((tile_b, Ap), lambda i: (i, 0)),
        ),
        compiler_params=pltpu.CompilerParams(
            dimension_semantics=("parallel",),
        ),
        cost_estimate=cost,
    )(x, w1p, b1p, w2p, b2p, w3p, b3p)

    # Cheap lane slice; consumers that accept the lane-dense (B, Ap) slab
    # (reading column 0) can skip this.
    return out[:, :n_actions]


# ---------------------------------------------------------------------------
# Init + reference (pure JAX) for correctness checking
# ---------------------------------------------------------------------------
def xavier_uniform(key, fan_in, fan_out):
    # torch.nn.init.xavier_uniform_ : U(-a, a), a = sqrt(6 / (fan_in + fan_out))
    a = jnp.sqrt(6.0 / (fan_in + fan_out))
    return jax.random.uniform(key, (fan_in, fan_out), jnp.float32, -a, a)


def linear_bias_init(key, fan_in, fan_out):
    # nn.Linear default bias init: U(-1/sqrt(fan_in), 1/sqrt(fan_in))
    bound = 1.0 / jnp.sqrt(float(fan_in))
    return jax.random.uniform(key, (fan_out,), jnp.float32, -bound, bound)


def init_actor_params(key, n_states, n_actions, hidden1=256, hidden2=256):
    ks = jax.random.split(key, 6)
    return {
        "fc1": (xavier_uniform(ks[0], n_states, hidden1),
                linear_bias_init(ks[1], n_states, hidden1)),
        "fc2": (xavier_uniform(ks[2], hidden1, hidden2),
                linear_bias_init(ks[3], hidden1, hidden2)),
        "fc3": (xavier_uniform(ks[4], hidden2, n_actions),
                linear_bias_init(ks[5], hidden2, n_actions)),
    }


def actor_reference(x, params):
    w1, b1 = params["fc1"]
    w2, b2 = params["fc2"]
    w3, b3 = params["fc3"]
    h = jax.nn.relu(x @ w1 + b1)
    h = jax.nn.relu(h @ w2 + b2)
    return jnp.tanh(h @ w3 + b3)


if __name__ == "__main__":
    # Pendulum-v1: n_states=3, n_actions=1
    n_states, n_actions = 3, 1
    hidden1 = hidden2 = 256
    batch = 2

    key = jax.random.PRNGKey(0)
    pkey, xkey = jax.random.split(key)
    params = init_actor_params(pkey, n_states, n_actions, hidden1, hidden2)
    x = jax.random.normal(xkey, (batch, n_states), jnp.float32)
    ref = actor_reference(x, params)

    # --- f32 weights: tight-tolerance correctness check ---------------------
    pp_f32 = prepare_actor_params(params, dtype=jnp.float32)
    out = jax.block_until_ready(actor_forward(x, pp_f32, n_actions))
    assert out.shape == (batch, n_actions), out.shape
    assert jnp.allclose(out, ref, atol=1e-5, rtol=1e-5), (out, ref)

    # --- large batch: two "parallel" grid steps + partial trailing block ----
    xb = jax.random.normal(xkey, (1000, n_states), jnp.float32)
    outb = jax.block_until_ready(actor_forward(xb, pp_f32, n_actions, max_tile_b=512))
    refb = actor_reference(xb, params)
    assert outb.shape == (1000, n_actions), outb.shape
    assert jnp.allclose(outb, refb, atol=1e-5, rtol=1e-5)

    # --- production default: bf16 matmul inputs, f32 accumulation -----------
    pp_bf16 = prepare_actor_params(params)  # dtype=jnp.bfloat16 by default
    out_bf = jax.block_until_ready(actor_forward(x, pp_bf16, n_actions))
    assert jnp.allclose(out_bf, ref, atol=2e-2, rtol=2e-2)

    print("KERNEL_OK")
</pallas_src>

<mosaic_0001>
module attributes {stable_mosaic.version = 11 : i64} {
  func.func @actor_kernel(%arg0: i32, %arg1: memref<8x3xf32, #tpu.memory_space<vmem>>, %arg2: memref<3x256xf32, #tpu.memory_space<vmem>>, %arg3: memref<1x256xf32, #tpu.memory_space<vmem>>, %arg4: memref<256x256xf32, #tpu.memory_space<vmem>>, %arg5: memref<1x256xf32, #tpu.memory_space<vmem>>, %arg6: memref<256x128xf32, #tpu.memory_space<vmem>>, %arg7: memref<1x128xf32, #tpu.memory_space<vmem>>, %arg8: memref<8x128xf32, #tpu.memory_space<vmem>>) attributes {dimension_semantics = [#tpu.dimension_semantics<parallel>], iteration_bounds = array<i64: 1>, scalar_prefetch = 0 : i64, scratch_operands = 0 : i64, tpu.core_type = #tpu.core_type<tc>, window_params = [{transform_indices = @transform_0, window_bounds = array<i64: 8, 3>}, {pipeline_mode = #tpu.pipeline_mode<synchronous>, transform_indices = @transform_1, window_bounds = array<i64: 3, 256>}, {pipeline_mode = #tpu.pipeline_mode<synchronous>, transform_indices = @transform_2, window_bounds = array<i64: 1, 256>}, {pipeline_mode = #tpu.pipeline_mode<synchronous>, transform_indices = @transform_3, window_bounds = array<i64: 256, 256>}, {pipeline_mode = #tpu.pipeline_mode<synchronous>, transform_indices = @transform_4, window_bounds = array<i64: 1, 256>}, {pipeline_mode = #tpu.pipeline_mode<synchronous>, transform_indices = @transform_5, window_bounds = array<i64: 256, 128>}, {pipeline_mode = #tpu.pipeline_mode<synchronous>, transform_indices = @transform_6, window_bounds = array<i64: 1, 128>}, {transform_indices = @transform_7, window_bounds = array<i64: 8, 128>}]} {
    %c0 = arith.constant 0 : index
    %c0_0 = arith.constant 0 : index
    %0 = vector.load %arg1[%c0, %c0_0] : memref<8x3xf32, #tpu.memory_space<vmem>>, vector<8x3xf32>
    %c0_1 = arith.constant 0 : index
    %c0_2 = arith.constant 0 : index
    %1 = vector.load %arg2[%c0_1, %c0_2] : memref<3x256xf32, #tpu.memory_space<vmem>>, vector<3x256xf32>
    %c0_3 = arith.constant 0 : index
    %c0_4 = arith.constant 0 : index
    %2 = vector.load %arg3[%c0_3, %c0_4] : memref<1x256xf32, #tpu.memory_space<vmem>>, vector<1x256xf32>
    %3 = vector.extract_strided_slice %0 {offsets = [0, 0], sizes = [8, 1], strides = [1, 1]} : vector<8x3xf32> to vector<8x1xf32>
    %4 = vector.extract_strided_slice %1 {offsets = [0, 0], sizes = [1, 256], strides = [1, 1]} : vector<3x256xf32> to vector<1x256xf32>
    %5 = vector.broadcast %3 : vector<8x1xf32> to vector<8x256xf32>
    %6 = vector.broadcast %4 : vector<1x256xf32> to vector<8x256xf32>
    %7 = arith.mulf %5, %6 : vector<8x256xf32>
    %8 = vector.broadcast %2 : vector<1x256xf32> to vector<8x256xf32>
    %9 = arith.addf %8, %7 : vector<8x256xf32>
    %10 = vector.extract_strided_slice %0 {offsets = [0, 1], sizes = [8, 1], strides = [1, 1]} : vector<8x3xf32> to vector<8x1xf32>
    %11 = vector.extract_strided_slice %1 {offsets = [1, 0], sizes = [1, 256], strides = [1, 1]} : vector<3x256xf32> to vector<1x256xf32>
    %12 = vector.broadcast %10 : vector<8x1xf32> to vector<8x256xf32>
    %13 = vector.broadcast %11 : vector<1x256xf32> to vector<8x256xf32>
    %14 = arith.mulf %12, %13 : vector<8x256xf32>
    %15 = arith.addf %9, %14 : vector<8x256xf32>
    %16 = vector.extract_strided_slice %0 {offsets = [0, 2], sizes = [8, 1], strides = [1, 1]} : vector<8x3xf32> to vector<8x1xf32>
    %17 = vector.extract_strided_slice %1 {offsets = [2, 0], sizes = [1, 256], strides = [1, 1]} : vector<3x256xf32> to vector<1x256xf32>
    %18 = vector.broadcast %16 : vector<8x1xf32> to vector<8x256xf32>
    %19 = vector.broadcast %17 : vector<1x256xf32> to vector<8x256xf32>
    %20 = arith.mulf %18, %19 : vector<8x256xf32>
    %21 = arith.addf %15, %20 : vector<8x256xf32>
    %cst = arith.constant 0.000000e+00 : f32
    %22 = vector.broadcast %cst : f32 to vector<8x256xf32>
    %23 = arith.maximumf %21, %22 : vector<8x256xf32>
    %c0_5 = arith.constant 0 : index
    %c0_6 = arith.constant 0 : index
    %24 = vector.load %arg4[%c0_5, %c0_6] : memref<256x256xf32, #tpu.memory_space<vmem>>, vector<256x256xf32>
    %cst_7 = arith.constant dense<0.000000e+00> : vector<8x256xf32>
    %25 = tpu.matmul %23, %24, %cst_7 {dimension_numbers = #tpu.dot_dimension_numbers<[1], [0], [0], [1], [0, 0, 1, 1], [], []>} : vector<8x256xf32>, vector<256x256xf32>, vector<8x256xf32> -> vector<8x256xf32>
    %c0_8 = arith.constant 0 : index
    %c0_9 = arith.constant 0 : index
    %26 = vector.load %arg5[%c0_8, %c0_9] : memref<1x256xf32, #tpu.memory_space<vmem>>, vector<1x256xf32>
    %27 = vector.broadcast %26 : vector<1x256xf32> to vector<8x256xf32>
    %28 = arith.addf %25, %27 : vector<8x256xf32>
    %cst_10 = arith.constant 0.000000e+00 : f32
    %29 = vector.broadcast %cst_10 : f32 to vector<8x256xf32>
    %30 = arith.maximumf %28, %29 : vector<8x256xf32>
    %c0_11 = arith.constant 0 : index
    %c0_12 = arith.constant 0 : index
    %31 = vector.load %arg6[%c0_11, %c0_12] : memref<256x128xf32, #tpu.memory_space<vmem>>, vector<256x128xf32>
    %cst_13 = arith.constant dense<0.000000e+00> : vector<8x128xf32>
    %32 = tpu.matmul %30, %31, %cst_13 {dimension_numbers = #tpu.dot_dimension_numbers<[1], [0], [0], [1], [0, 0, 1, 1], [], []>} : vector<8x256xf32>, vector<256x128xf32>, vector<8x128xf32> -> vector<8x128xf32>
    %c0_14 = arith.constant 0 : index
    %c0_15 = arith.constant 0 : index
    %33 = vector.load %arg7[%c0_14, %c0_15] : memref<1x128xf32, #tpu.memory_space<vmem>>, vector<1x128xf32>
    %34 = vector.broadcast %33 : vector<1x128xf32> to vector<8x128xf32>
    %35 = arith.addf %32, %34 : vector<8x128xf32>
    %36 = math.tanh %35 : vector<8x128xf32>
    %c0_16 = arith.constant 0 : index
    %c0_17 = arith.constant 0 : index
    %37 = vector.load %arg8[%c0_16, %c0_17] : memref<8x128xf32, #tpu.memory_space<vmem>>, vector<8x128xf32>
    tpu.vector_store %arg8[%c0_16, %c0_17], %36 {strides = array<i32>} : memref<8x128xf32, #tpu.memory_space<vmem>>, vector<8x128xf32>,
    return
  }
  func.func @transform_0(%arg0: i32) -> (i32, i32) {
    %c0_i32 = arith.constant 0 : i32
    %c0_i32_0 = arith.constant 0 : i32
    return %arg0, %c0_i32 : i32, i32
  }
  func.func @transform_1(%arg0: i32) -> (i32, i32) {
    %c0_i32 = arith.constant 0 : i32
    %c0_i32_0 = arith.constant 0 : i32
    %c0_i32_1 = arith.constant 0 : i32
    return %c0_i32, %c0_i32_0 : i32, i32
  }
  func.func @transform_2(%arg0: i32) -> (i32, i32) {
    %c0_i32 = arith.constant 0 : i32
    %c0_i32_0 = arith.constant 0 : i32
    %c0_i32_1 = arith.constant 0 : i32
    return %c0_i32, %c0_i32_0 : i32, i32
  }
  func.func @transform_3(%arg0: i32) -> (i32, i32) {
    %c0_i32 = arith.constant 0 : i32
    %c0_i32_0 = arith.constant 0 : i32
    %c0_i32_1 = arith.constant 0 : i32
    return %c0_i32, %c0_i32_0 : i32, i32
  }
  func.func @transform_4(%arg0: i32) -> (i32, i32) {
    %c0_i32 = arith.constant 0 : i32
    %c0_i32_0 = arith.constant 0 : i32
    %c0_i32_1 = arith.constant 0 : i32
    return %c0_i32, %c0_i32_0 : i32, i32
  }
  func.func @transform_5(%arg0: i32) -> (i32, i32) {
    %c0_i32 = arith.constant 0 : i32
    %c0_i32_0 = arith.constant 0 : i32
    %c0_i32_1 = arith.constant 0 : i32
    return %c0_i32, %c0_i32_0 : i32, i32
  }
  func.func @transform_6(%arg0: i32) -> (i32, i32) {
    %c0_i32 = arith.constant 0 : i32
    %c0_i32_0 = arith.constant 0 : i32
    %c0_i32_1 = arith.constant 0 : i32
    return %c0_i32, %c0_i32_0 : i32, i32
  }
  func.func @transform_7(%arg0: i32) -> (i32, i32) {
    %c0_i32 = arith.constant 0 : i32
    %c0_i32_0 = arith.constant 0 : i32
    return %arg0, %c0_i32 : i32, i32
  }
}

</mosaic_0001>

<llo_original>
// kernel: actor_forward.1
$region0: #{actor_forward.1}
  #allocation0 [shape = 'u32[]', space=smem, size = 0x4, offset = 0x4, fixed_abs, tag = 'smem constant byte address 0x4 - core index']
  #allocation1 [shape = 'u32[144,128]{1,0:T(1,128)}', space=vmem, size = 0x12000, scoped, tag = 'internal scratch']
  %s0 = inlined_call_operand.hbm [shape: f32[2,3], index: 0, kind: input, shape index: {}]
  %s1 = inlined_call_operand.hbm [shape: f32[3,256], index: 1, kind: input, shape index: {}]
  %s2 = inlined_call_operand.vmem [shape: f32[1,256], index: 2, kind: input, shape index: {}]
  %s3 = inlined_call_operand.hbm [shape: f32[256,256], index: 3, kind: input, shape index: {}]
  %s4 = inlined_call_operand.vmem [shape: f32[1,256], index: 4, kind: input, shape index: {}]
  %s5 = inlined_call_operand.hbm [shape: f32[256,128], index: 5, kind: input, shape index: {}]
  %s6 = inlined_call_operand.vmem [shape: f32[1,128], index: 6, kind: input, shape index: {}]
  %s7 = inlined_call_operand.vmem [shape: f32[2,128], index: 7, kind: output, shape index: {}]
  %s8 = sld [smem:[#allocation0]]
  $region84: #{actor_forward.1} parent=0
    _
  %s10 = ssub.s32 1, %s8
  %s11 = scalar_select 0, %s10, %s8
  $region1: #{actor_forward.1} parent=0
    #allocation2 [shape = 'u8[4096]{0}', space=vmem, size = 0x1000, scoped, tag = 'input window, operand 0, single buffered']
    #allocation3 [shape = 's32[1]{0}', space=sflag, size = 0x4, scoped, tag = 'scoped memory for actor_forward.1']
    #allocation4 [shape = 'u8[4096]{0}', space=vmem, size = 0x1000, scoped, tag = 'input window, operand 1, single buffered']
    #allocation5 [shape = 's32[1]{0}', space=sflag, size = 0x4, scoped, tag = 'scoped memory for actor_forward.1']
    #allocation6 [shape = 'u8[262144]{0}', space=vmem, size = 0x40000, scoped, tag = 'input window, operand 3, single buffered']
    #allocation7 [shape = 'u8[131072]{0}', space=vmem, size = 0x20000, scoped, tag = 'input window, operand 5, single buffered']
    #allocation8 [shape = 's32[1]{0}', space=sflag, size = 0x4, scoped, tag = 'scoped memory for actor_forward.1']
    #allocation9 [shape = 'u8[4096]{0}', space=vmem, size = 0x1000, scoped, tag = 'output window, operand 0, single buffered']
    %12 = vsyncpa [#allocation3], 0
    %13 = vsyncpa [#allocation5], 0
    %14 = vsyncpa [#allocation8], 0
    // Predicated region
    $region2: #{actor_forward.1} parent=1 // pred_check
      _
    $region3: #{actor_forward.1} parent=1 // pred_check_branch
      %16 = sbr.rel (0) target = $region5
    $region4: #{actor_forward.1} parent=1 // pred_region
      %s18 = ssub.s32 128, 32
      %19 = vsyncadd [#allocation3], %s18
      %s20 = sshll.u32 [#allocation2], 4
      %s21 = int_to_ptr.vmem [resolvable:$true] %s20
      %26 = dma.hbm_to_vmem [thread:$0]  %s0, 32, %s21, [#allocation3], 32, 32, 2
    $region5: #{actor_forward.1} parent=1 // pred_fallthru
      _
    // Predicated region
    $region6: #{actor_forward.1} parent=1 // pred_check
      _
    $region7: #{actor_forward.1} parent=1 // pred_check_branch
      %28 = sbr.rel (0) target = $region9
    $region8: #{actor_forward.1} parent=1 // pred_region
      %s30 = ssub.s32 128, 128
      %31 = vsyncadd [#allocation5], %s30
      %s33 = sshll.u32 [#allocation4], 4
      %s34 = int_to_ptr.vmem [resolvable:$true] %s33
      %36 = dma.hbm_to_vmem [thread:$0]  %s1, 128, %s34, [#allocation5]
    $region9: #{actor_forward.1} parent=1 // pred_fallthru
      _
    // Predicated region
    $region10: #{actor_forward.1} parent=1 // pred_check
      _
    $region11: #{actor_forward.1} parent=1 // pred_check_branch
      %38 = sbr.rel (0) target = $region13
    $region12: #{actor_forward.1} parent=1 // pred_region
      _
    $region13: #{actor_forward.1} parent=1 // pred_fallthru
      _
    // Predicated region
    $region14: #{actor_forward.1} parent=1 // pred_check
      _
    $region15: #{actor_forward.1} parent=1 // pred_check_branch
      %40 = sbr.rel (0) target = $region17
    $region16: #{actor_forward.1} parent=1 // pred_region
      %s42 = ssub.s32 8192, 8192
      %43 = vsyncadd [#allocation5], %s42
      %s44 = sshll.u32 [#allocation6], 4
      %s45 = int_to_ptr.vmem [resolvable:$true] %s44
      %50 = dma.hbm_to_vmem [thread:$0]  %s3, 8192, %s45, [#allocation5], 256, 256, 16
    $region17: #{actor_forward.1} parent=1 // pred_fallthru
      _
    // Predicated region
    $region18: #{actor_forward.1} parent=1 // pred_check
      _
    $region19: #{actor_forward.1} parent=1 // pred_check_branch
      %52 = sbr.rel (0) target = $region21
    $region20: #{actor_forward.1} parent=1 // pred_region
      _
    $region21: #{actor_forward.1} parent=1 // pred_fallthru
      _
    // Predicated region
    $region22: #{actor_forward.1} parent=1 // pred_check
      _
    $region23: #{actor_forward.1} parent=1 // pred_check_branch
      %54 = sbr.rel (0) target = $region25
    $region24: #{actor_forward.1} parent=1 // pred_region
      %s56 = ssub.s32 4096, 4096
      %57 = vsyncadd [#allocation8], %s56
      %s58 = sshll.u32 [#allocation7], 4
      %s59 = int_to_ptr.vmem [resolvable:$true] %s58
      %64 = dma.hbm_to_vmem [thread:$0]  %s5, 4096, %s59, [#allocation8], 128, 128, 8
    $region25: #{actor_forward.1} parent=1 // pred_fallthru
      _
    // Predicated region
    $region26: #{actor_forward.1} parent=1 // pred_check
      _
    $region27: #{actor_forward.1} parent=1 // pred_check_branch
      %66 = sbr.rel (0) target = $region29
    $region28: #{actor_forward.1} parent=1 // pred_region
      _
    $region29: #{actor_forward.1} parent=1 // pred_fallthru
      _
    // Predicated region
    $region30: #{actor_forward.1} parent=1 // pred_check
      _
    $region31: #{actor_forward.1} parent=1 // pred_check_branch
      %68 = sbr.rel (0) target = $region33
    $region32: #{actor_forward.1} parent=1 // pred_region
      %69 = dma.done [#allocation3], 128
    $region33: #{actor_forward.1} parent=1 // pred_fallthru
      _
    // Predicated region
    $region34: #{actor_forward.1} parent=1 // pred_check
      _
    $region35: #{actor_forward.1} parent=1 // pred_check_branch
      %71 = sbr.rel (0) target = $region37
    $region36: #{actor_forward.1} parent=1 // pred_region
      %72 = dma.done [#allocation5], 128
    $region37: #{actor_forward.1} parent=1 // pred_fallthru
      _
    // Predicated region
    $region38: #{actor_forward.1} parent=1 // pred_check
      _
    $region39: #{actor_forward.1} parent=1 // pred_check_branch
      %74 = sbr.rel (0) target = $region41
    $region40: #{actor_forward.1} parent=1 // pred_region
      %75 = dma.done [#allocation5], 8192
    $region41: #{actor_forward.1} parent=1 // pred_fallthru
      _
    // Predicated region
    $region42: #{actor_forward.1} parent=1 // pred_check
      _
    $region43: #{actor_forward.1} parent=1 // pred_check_branch
      %77 = sbr.rel (0) target = $region45
    $region44: #{actor_forward.1} parent=1 // pred_region
      %78 = dma.done [#allocation8], 4096
    $region45: #{actor_forward.1} parent=1 // pred_fallthru
      _
    %v79 = vld [vmem:[#allocation2] sm:$0xff]
    %v80 = vld [vmem:[#allocation4] sm:$0x77]
    %v81 = vld [vmem:[%s2] sm:$0x3]
    %83 = vset.pattern.permute.xlu0 0
    %84 = vperm.xlu0 %83, %v79
    %v85 = vpop.permute.xlu0 %84
    %v88 = vlaneseq
    %v89 = vshrl.u32 %v88, 7
    %v90 = vsub.s32 0, %v89
    %v91 = vrot.slane %v80, %v90
    %v92 = vlaneseq
    %v93 = vshrl.u32 %v92, 7
    %v94 = vsub.s32 4, %v93
    %v95 = vrot.slane %v80, %v94
    %v98 = vlaneseq
    %v99 = vshrl.u32 %v98, 7
    %v100 = vsub.s32 0, %v99
    %v101 = vrot.slane %v91, %v100
    %v102 = vlaneseq
    %v103 = vshrl.u32 %v102, 7
    %v104 = vsub.s32 0, %v103
    %v105 = vrot.slane %v95, %v104
    %v106 = vmul.f32 %v85, %v101
    %v107 = vmul.f32 %v85, %v105
    %v109 = vlaneseq
    %v110 = vshrl.u32 %v109, 7
    %v111 = vsub.s32 0, %v110
    %v112 = vrot.slane %v81, %v111
    %v113 = vlaneseq
    %v114 = vshrl.u32 %v113, 7
    %v115 = vsub.s32 1, %v114
    %v116 = vrot.slane %v81, %v115
    %v119 = vadd.f32 %v112, %v106
    %v120 = vadd.f32 %v116, %v107
    %121 = vset.pattern.permute.xlu0 1
    %122 = vperm.xlu0 %121, %v79
    %v123 = vpop.permute.xlu0 %122
    %v125 = vlaneseq
    %v126 = vshrl.u32 %v125, 7
    %v127 = vsub.s32 1, %v126
    %v128 = vrot.slane %v80, %v127
    %v129 = vlaneseq
    %v130 = vshrl.u32 %v129, 7
    %v131 = vsub.s32 5, %v130
    %v132 = vrot.slane %v80, %v131
    %v135 = vlaneseq
    %v136 = vshrl.u32 %v135, 7
    %v137 = vsub.s32 1, %v136
    %v138 = vrot.slane %v128, %v137
    %v139 = vlaneseq
    %v140 = vshrl.u32 %v139, 7
    %v141 = vsub.s32 1, %v140
    %v142 = vrot.slane %v132, %v141
    %v143 = vmul.f32 %v123, %v138
    %v144 = vmul.f32 %v123, %v142
    %v145 = vadd.f32 %v119, %v143
    %v146 = vadd.f32 %v120, %v144
    %147 = vset.pattern.permute.xlu0 2
    %148 = vperm.xlu0 %147, %v79
    %v149 = vpop.permute.xlu0 %148
    %v151 = vlaneseq
    %v152 = vshrl.u32 %v151, 7
    %v153 = vsub.s32 2, %v152
    %v154 = vrot.slane %v80, %v153
    %v155 = vlaneseq
    %v156 = vshrl.u32 %v155, 7
    %v157 = vsub.s32 6, %v156
    %v158 = vrot.slane %v80, %v157
    %v161 = vlaneseq
    %v162 = vshrl.u32 %v161, 7
    %v163 = vsub.s32 2, %v162
    %v164 = vrot.slane %v154, %v163
    %v165 = vlaneseq
    %v166 = vshrl.u32 %v165, 7
    %v167 = vsub.s32 2, %v166
    %v168 = vrot.slane %v158, %v167
    %v169 = vmul.f32 %v149, %v164
    %v170 = vmul.f32 %v149, %v168
    %v171 = vadd.f32 %v145, %v169
    %v172 = vadd.f32 %v146, %v170
    %v173 = vmax.f32 %v171, 0.0
    %v174 = vmax.f32 %v172, 0.0
    %v175 = vld [vmem:[#allocation6] sm:$0xff]
    %v176 = vld [vmem:[#allocation6 + $0x8] sm:$0xff]
    %v177 = vld [vmem:[#allocation6 + $0x10] sm:$0xff]
    %v178 = vld [vmem:[#allocation6 + $0x18] sm:$0xff]
    %v179 = vld [vmem:[#allocation6 + $0x20] sm:$0xff]
    %v180 = vld [vmem:[#allocation6 + $0x28] sm:$0xff]
    %v181 = vld [vmem:[#allocation6 + $0x30] sm:$0xff]
    %v182 = vld [vmem:[#allocation6 + $0x38] sm:$0xff]
    %v183 = vld [vmem:[#allocation6 + $0x40] sm:$0xff]
    %v184 = vld [vmem:[#allocation6 + $0x48] sm:$0xff]
    %v185 = vld [vmem:[#allocation6 + $0x50] sm:$0xff]
    %v186 = vld [vmem:[#allocation6 + $0x58] sm:$0xff]
    %v187 = vld [vmem:[#allocation6 + $0x60] sm:$0xff]
    %v188 = vld [vmem:[#allocation6 + $0x68] sm:$0xff]
    %v189 = vld [vmem:[#allocation6 + $0x70] sm:$0xff]
    %v190 = vld [vmem:[#allocation6 + $0x78] sm:$0xff]
    %v191 = vld [vmem:[#allocation6 + $0x80] sm:$0xff]
    %v192 = vld [vmem:[#allocation6 + $0x88] sm:$0xff]
    %v193 = vld [vmem:[#allocation6 + $0x90] sm:$0xff]
    %v194 = vld [vmem:[#allocation6 + $0x98] sm:$0xff]
    %v195 = vld [vmem:[#allocation6 + $0xa0] sm:$0xff]
    %v196 = vld [vmem:[#allocation6 + $0xa8] sm:$0xff]
    %v197 = vld [vmem:[#allocation6 + $0xb0] sm:$0xff]
    %v198 = vld [vmem:[#allocation6 + $0xb8] sm:$0xff]
    %v199 = vld [vmem:[#allocation6 + $0xc0] sm:$0xff]
    %v200 = vld [vmem:[#allocation6 + $0xc8] sm:$0xff]
    %v201 = vld [vmem:[#allocation6 + $0xd0] sm:$0xff]
    %v202 = vld [vmem:[#allocation6 + $0xd8] sm:$0xff]
    %v203 = vld [vmem:[#allocation6 + $0xe0] sm:$0xff]
    %v204 = vld [vmem:[#allocation6 + $0xe8] sm:$0xff]
    %v205 = vld [vmem:[#allocation6 + $0xf0] sm:$0xff]
    %v206 = vld [vmem:[#allocation6 + $0xf8] sm:$0xff]
    %v207 = vld [vmem:[#allocation6 + $0x100] sm:$0xff]
    %v208 = vld [vmem:[#allocation6 + $0x108] sm:$0xff]
    %v209 = vld [vmem:[#allocation6 + $0x110] sm:$0xff]
    %v210 = vld [vmem:[#allocation6 + $0x118] sm:$0xff]
    %v211 = vld [vmem:[#allocation6 + $0x120] sm:$0xff]
    %v212 = vld [vmem:[#allocation6 + $0x128] sm:$0xff]
    %v213 = vld [vmem:[#allocation6 + $0x130] sm:$0xff]
    %v214 = vld [vmem:[#allocation6 + $0x138] sm:$0xff]
    %v215 = vld [vmem:[#allocation6 + $0x140] sm:$0xff]
    %v216 = vld [vmem:[#allocation6 + $0x148] sm:$0xff]
    %v217 = vld [vmem:[#allocation6 + $0x150] sm:$0xff]
    %v218 = vld [vmem:[#allocation6 + $0x158] sm:$0xff]
    %v219 = vld [vmem:[#allocation6 + $0x160] sm:$0xff]
    %v220 = vld [vmem:[#allocation6 + $0x168] sm:$0xff]
    %v221 = vld [vmem:[#allocation6 + $0x170] sm:$0xff]
    %v222 = vld [vmem:[#allocation6 + $0x178] sm:$0xff]
    %v223 = vld [vmem:[#allocation6 + $0x180] sm:$0xff]
    %v224 = vld [vmem:[#allocation6 + $0x188] sm:$0xff]
    %v225 = vld [vmem:[#allocation6 + $0x190] sm:$0xff]
    %v226 = vld [vmem:[#allocation6 + $0x198] sm:$0xff]
    %v227 = vld [vmem:[#allocation6 + $0x1a0] sm:$0xff]
    %v228 = vld [vmem:[#allocation6 + $0x1a8] sm:$0xff]
    %v229 = vld [vmem:[#allocation6 + $0x1b0] sm:$0xff]
    %v230 = vld [vmem:[#allocation6 + $0x1b8] sm:$0xff]
    %v231 = vld [vmem:[#allocation6 + $0x1c0] sm:$0xff]
    %v232 = vld [vmem:[#allocation6 + $0x1c8] sm:$0xff]
    %v233 = vld [vmem:[#allocation6 + $0x1d0] sm:$0xff]
    %v234 = vld [vmem:[#allocation6 + $0x1d8] sm:$0xff]
    %v235 = vld [vmem:[#allocation6 + $0x1e0] sm:$0xff]
    %v236 = vld [vmem:[#allocation6 + $0x1e8] sm:$0xff]
    %v237 = vld [vmem:[#allocation6 + $0x1f0] sm:$0xff]
    %v238 = vld [vmem:[#allocation6 + $0x1f8] sm:$0xff]
    %v239 = vld [vmem:[%s4] sm:$0x3]
    %v241 = vlaneseq
    %v242 = vshrl.u32 %v241, 7
    %v243 = vsub.s32 0, %v242
    %v244 = vrot.slane %v239, %v243
    %v245 = vlaneseq
    %v246 = vshrl.u32 %v245, 7
    %v247 = vsub.s32 1, %v246
    %v248 = vrot.slane %v239, %v247
    %251 = vmatprep.subr.mxu0 %v206
    %252 = vmatpush1.msra.mxu0 %v205
    %253 = vmatprep.subr.mxu0 %v204
    %254 = vmatpush1.msra.mxu0 %v203
    %255 = vmatprep.subr.mxu0 %v202
    %256 = vmatpush1.msra.mxu0 %v201
    %257 = vmatprep.subr.mxu0 %v200
    %258 = vmatpush1.msra.mxu0 %v199
    %259 = vmatprep.subr.mxu0 %v198
    %260 = vmatpush1.msra.mxu0 %v197
    %261 = vmatprep.subr.mxu0 %v196
    %262 = vmatpush1.msra.mxu0 %v195
    %263 = vmatprep.subr.mxu0 %v194
    %264 = vmatpush1.msra.mxu0 %v193
    %265 = vmatprep.subr.mxu0 %v192
    %266 = vmatpush1.msra.mxu0 %v191
    %267 = vmatprep.subr.mxu0 %v190
    %268 = vmatpush1.msra.mxu0 %v189
    %269 = vmatprep.subr.mxu0 %v188
    %270 = vmatpush1.msra.mxu0 %v187
    %271 = vmatprep.subr.mxu0 %v186
    %272 = vmatpush1.msra.mxu0 %v185
    %273 = vmatprep.subr.mxu0 %v184
    %274 = vmatpush1.msra.mxu0 %v183
    %275 = vmatprep.subr.mxu0 %v182
    %276 = vmatpush1.msra.mxu0 %v181
    %277 = vmatprep.subr.mxu0 %v180
    %278 = vmatpush1.msra.mxu0 %v179
    %279 = vmatprep.subr.mxu0 %v178
    %280 = vmatpush1.msra.mxu0 %v177
    %281 = vmatprep.subr.mxu0 %v176
    %282 = vmatpush1.msra.mxu0 %v175
    %283 = vmatprep.subr.mxu0 %v238
    %284 = vmatpush2.msra.mxu0 %v237
    %285 = vmatprep.subr.mxu0 %v236
    %286 = vmatpush2.msra.mxu0 %v235
    %287 = vmatprep.subr.mxu0 %v234
    %288 = vmatpush2.msra.mxu0 %v233
    %289 = vmatprep.subr.mxu0 %v232
    %290 = vmatpush2.msra.mxu0 %v231
    %291 = vmatprep.subr.mxu0 %v230
    %292 = vmatpush2.msra.mxu0 %v229
    %293 = vmatprep.subr.mxu0 %v228
    %294 = vmatpush2.msra.mxu0 %v227
    %295 = vmatprep.subr.mxu0 %v226
    %296 = vmatpush2.msra.mxu0 %v225
    %297 = vmatprep.subr.mxu0 %v224
    %298 = vmatpush2.msra.mxu0 %v223
    %299 = vmatprep.subr.mxu0 %v222
    %300 = vmatpush2.msra.mxu0 %v221
    %301 = vmatprep.subr.mxu0 %v220
    %302 = vmatpush2.msra.mxu0 %v219
    %303 = vmatprep.subr.mxu0 %v218
    %304 = vmatpush2.msra.mxu0 %v217
    %305 = vmatprep.subr.mxu0 %v216
    %306 = vmatpush2.msra.mxu0 %v215
    %307 = vmatprep.subr.mxu0 %v214
    %308 = vmatpush2.msra.mxu0 %v213
    %309 = vmatprep.subr.mxu0 %v212
    %310 = vmatpush2.msra.mxu0 %v211
    %311 = vmatprep.subr.mxu0 %v210
    %312 = vmatpush2.msra.mxu0 %v209
    %313 = vmatprep.subr.mxu0 %v208
    %314 = vmatpush2.msra.mxu0 %v207
    %315 = vmatprep.mubr.f32.mxu0 %v174
    %316 = vmatmul.mubr.f32.gmra.mxu0 %v173
    %v317 = vpop.f32.mrf.mxu0
    %v318 = vadd.f32 %v244, %v317
    %v319 = vpop.f32.mrf.mxu0
    %v320 = vadd.f32 %v248, %v319
    %321 = vdwg.mxu0
    %v322 = vmax.f32 %v318, 0.0
    %v323 = vmax.f32 %v320, 0.0
    %v324 = vld [vmem:[#allocation7] sm:$0xff]
    %v325 = vld [vmem:[#allocation7 + $0x8] sm:$0xff]
    %v326 = vld [vmem:[#allocation7 + $0x10] sm:$0xff]
    %v327 = vld [vmem:[#allocation7 + $0x18] sm:$0xff]
    %v328 = vld [vmem:[#allocation7 + $0x20] sm:$0xff]
    %v329 = vld [vmem:[#allocation7 + $0x28] sm:$0xff]
    %v330 = vld [vmem:[#allocation7 + $0x30] sm:$0xff]
    %v331 = vld [vmem:[#allocation7 + $0x38] sm:$0xff]
    %v332 = vld [vmem:[#allocation7 + $0x40] sm:$0xff]
    %v333 = vld [vmem:[#allocation7 + $0x48] sm:$0xff]
    %v334 = vld [vmem:[#allocation7 + $0x50] sm:$0xff]
    %v335 = vld [vmem:[#allocation7 + $0x58] sm:$0xff]
    %v336 = vld [vmem:[#allocation7 + $0x60] sm:$0xff]
    %v337 = vld [vmem:[#allocation7 + $0x68] sm:$0xff]
    %v338 = vld [vmem:[#allocation7 + $0x70] sm:$0xff]
    %v339 = vld [vmem:[#allocation7 + $0x78] sm:$0xff]
    %v340 = vld [vmem:[#allocation7 + $0x80] sm:$0xff]
    %v341 = vld [vmem:[#allocation7 + $0x88] sm:$0xff]
    %v342 = vld [vmem:[#allocation7 + $0x90] sm:$0xff]
    %v343 = vld [vmem:[#allocation7 + $0x98] sm:$0xff]
    %v344 = vld [vmem:[#allocation7 + $0xa0] sm:$0xff]
    %v345 = vld [vmem:[#allocation7 + $0xa8] sm:$0xff]
    %v346 = vld [vmem:[#allocation7 + $0xb0] sm:$0xff]
    %v347 = vld [vmem:[#allocation7 + $0xb8] sm:$0xff]
    %v348 = vld [vmem:[#allocation7 + $0xc0] sm:$0xff]
    %v349 = vld [vmem:[#allocation7 + $0xc8] sm:$0xff]
    %v350 = vld [vmem:[#allocation7 + $0xd0] sm:$0xff]
    %v351 = vld [vmem:[#allocation7 + $0xd8] sm:$0xff]
    %v352 = vld [vmem:[#allocation7 + $0xe0] sm:$0xff]
    %v353 = vld [vmem:[#allocation7 + $0xe8] sm:$0xff]
    %v354 = vld [vmem:[#allocation7 + $0xf0] sm:$0xff]
    %v355 = vld [vmem:[#allocation7 + $0xf8] sm:$0xff]
    %v356 = vld [vmem:[%s6] sm:$0x1]
    %v358 = vlaneseq
    %v359 = vshrl.u32 %v358, 7
    %v360 = vsub.s32 0, %v359
    %v361 = vrot.slane %v356, %v360
    %363 = vmatprep.subr.mxu0 0.0
    %364 = vmatpush1.msra.mxu0 %v339
    %365 = vmatprep.subr.mxu0 0.0
    %366 = vmatpush1.msra.mxu0 %v338
    %367 = vmatprep.subr.mxu0 0.0
    %368 = vmatpush1.msra.mxu0 %v337
    %369 = vmatprep.subr.mxu0 0.0
    %370 = vmatpush1.msra.mxu0 %v336
    %371 = vmatprep.subr.mxu0 0.0
    %372 = vmatpush1.msra.mxu0 %v335
    %373 = vmatprep.subr.mxu0 0.0
    %374 = vmatpush1.msra.mxu0 %v334
    %375 = vmatprep.subr.mxu0 0.0
    %376 = vmatpush1.msra.mxu0 %v333
    %377 = vmatprep.subr.mxu0 0.0
    %378 = vmatpush1.msra.mxu0 %v332
    %379 = vmatprep.subr.mxu0 0.0
    %380 = vmatpush1.msra.mxu0 %v331
    %381 = vmatprep.subr.mxu0 0.0
    %382 = vmatpush1.msra.mxu0 %v330
    %383 = vmatprep.subr.mxu0 0.0
    %384 = vmatpush1.msra.mxu0 %v329
    %385 = vmatprep.subr.mxu0 0.0
    %386 = vmatpush1.msra.mxu0 %v328
    %387 = vmatprep.subr.mxu0 0.0
    %388 = vmatpush1.msra.mxu0 %v327
    %389 = vmatprep.subr.mxu0 0.0
    %390 = vmatpush1.msra.mxu0 %v326
    %391 = vmatprep.subr.mxu0 0.0
    %392 = vmatpush1.msra.mxu0 %v325
    %393 = vmatprep.subr.mxu0 0.0
    %394 = vmatpush1.msra.mxu0 %v324
    %395 = vmatprep.subr.mxu0 0.0
    %396 = vmatpush2.msra.mxu0 %v355
    %397 = vmatprep.subr.mxu0 0.0
    %398 = vmatpush2.msra.mxu0 %v354
    %399 = vmatprep.subr.mxu0 0.0
    %400 = vmatpush2.msra.mxu0 %v353
    %401 = vmatprep.subr.mxu0 0.0
    %402 = vmatpush2.msra.mxu0 %v352
    %403 = vmatprep.subr.mxu0 0.0
    %404 = vmatpush2.msra.mxu0 %v351
    %405 = vmatprep.subr.mxu0 0.0
    %406 = vmatpush2.msra.mxu0 %v350
    %407 = vmatprep.subr.mxu0 0.0
    %408 = vmatpush2.msra.mxu0 %v349
    %409 = vmatprep.subr.mxu0 0.0
    %410 = vmatpush2.msra.mxu0 %v348
    %411 = vmatprep.subr.mxu0 0.0
    %412 = vmatpush2.msra.mxu0 %v347
    %413 = vmatprep.subr.mxu0 0.0
    %414 = vmatpush2.msra.mxu0 %v346
    %415 = vmatprep.subr.mxu0 0.0
    %416 = vmatpush2.msra.mxu0 %v345
    %417 = vmatprep.subr.mxu0 0.0
    %418 = vmatpush2.msra.mxu0 %v344
    %419 = vmatprep.subr.mxu0 0.0
    %420 = vmatpush2.msra.mxu0 %v343
    %421 = vmatprep.subr.mxu0 0.0
    %422 = vmatpush2.msra.mxu0 %v342
    %423 = vmatprep.subr.mxu0 0.0
    %424 = vmatpush2.msra.mxu0 %v341
    %425 = vmatprep.subr.mxu0 0.0
    %426 = vmatpush2.msra.mxu0 %v340
    %427 = vmatprep.mubr.f32.mxu0 %v323
    %428 = vmatmul.mubr.f32.gmra.mxu0 %v322
    %v429 = vpop.f32.mrf.mxu0
    %v430 = vadd.f32 %v361, %v429
    %v431 = vpop.f32.mrf.mxu0
    %432 = vdwg.mxu0
    %v433 = vtanh.pop %v430
    %434 = vst [vmem:[#allocation9] sm:$0xff] %v433
    // Predicated region
    $region46: #{actor_forward.1} parent=1 // pred_check
      _
    $region47: #{actor_forward.1} parent=1 // pred_check_branch
      %436 = sbr.rel (0) target = $region49
    $region48: #{actor_forward.1} parent=1 // pred_region
      // Predicated region
      $region50: #{actor_forward.1} parent=48 // pred_check
        _
      $region51: #{actor_forward.1} parent=48 // pred_check_branch
        %438 = sbr.rel (0) target = $region53
      $region52: #{actor_forward.1} parent=48 // pred_region
        // Predicated region
        $region54: #{actor_forward.1} parent=52 // pred_check
          _
        $region55: #{actor_forward.1} parent=52 // pred_check_branch
          %440 = sbr.rel target = $region57
        $region56: #{actor_forward.1} parent=52 // pred_region
          // Predicated region
          $region69: #{actor_forward.1} parent=56 // pred_check
            _
          $region70: #{actor_forward.1} parent=56 // pred_check_branch
            %456 = sbr.rel (0) target = $region72
          $region71: #{actor_forward.1} parent=56 // pred_region
            %s458 = ssub.s32 4, 1
            loop: start=0, step=1, limit=1
            $region73: #{actor_forward.1} parent=71 // loop_pre_header
              _
            $region74: #{actor_forward.1} parent=71 // loop_header
              %s460 = sphi 0, %s464
              %p461 = scmp.ge.s32.totalorder %s460, 1
              %s465 = sphi [#allocation9], [#allocation9]
              %s466 = sphi %s7, %s7
            $region75: #{actor_forward.1} parent=71 // loop_header_branch
              %463 = sbr.rel (%p461) target = $region79
            $region76: #{actor_forward.1} parent=71 // loop_body
              %v467 = vld [vmem:[%s465] sm:%s458]
              %468 = vst [vmem:[%s466] sm:%s458] %v467
            $region77: #{actor_forward.1} parent=71 // loop_footer
              %s464 = sadd.s32 1, %s460
            $region78: #{actor_forward.1} parent=71 // loop_footer_branch
              %459 = sbr.rel target = $region74
            $region79: #{actor_forward.1} parent=71 // loop_exit
              _
          $region72: #{actor_forward.1} parent=56 // pred_fallthru
            _
        $region57: #{actor_forward.1} parent=52 // pred_fallthru
          _
        // Predicated region
        $region58: #{actor_forward.1} parent=52 // pred_check
          _
        $region59: #{actor_forward.1} parent=52 // pred_check_branch
          %442 = sbr.rel (0) target = $region61
        $region60: #{actor_forward.1} parent=52 // pred_region
          %s444 = ssub.s32 4, 1
          loop: start=0, step=1, limit=1
          $region62: #{actor_forward.1} parent=60 // loop_pre_header
            _
          $region63: #{actor_forward.1} parent=60 // loop_header
            %s446 = sphi 0, %s450
            %p447 = scmp.ge.s32.totalorder %s446, 1
            %s451 = sphi [#allocation9], [#allocation9]
            %s452 = sphi %s7, %s7
          $region64: #{actor_forward.1} parent=60 // loop_header_branch
            %449 = sbr.rel (%p447) target = $region68
          $region65: #{actor_forward.1} parent=60 // loop_body
            %v453 = vld [vmem:[%s451] sm:%s444]
            %454 = vst [vmem:[%s452] sm:%s444] %v453
          $region66: #{actor_forward.1} parent=60 // loop_footer
            %s450 = sadd.s32 1, %s446
          $region67: #{actor_forward.1} parent=60 // loop_footer_branch
            %445 = sbr.rel target = $region63
          $region68: #{actor_forward.1} parent=60 // loop_exit
            _
        $region61: #{actor_forward.1} parent=52 // pred_fallthru
          _
      $region53: #{actor_forward.1} parent=48 // pred_fallthru
        _
      %469 = vnop
    $region49: #{actor_forward.1} parent=1 // pred_fallthru
      _
    // Predicated region
    $region80: #{actor_forward.1} parent=1 // pred_check
      _
    $region81: #{actor_forward.1} parent=1 // pred_check_branch
      %471 = sbr.rel (0) target = $region83
    $region82: #{actor_forward.1} parent=1 // pred_region
      _
    $region83: #{actor_forward.1} parent=1 // pred_fallthru
      _
    %472 = vsyncpa [#allocation3], 1
    %473 = vsyncpa [#allocation5], 1
    %474 = vsyncpa [#allocation8], 1

</llo_original>
